<compile_context>
chip_gen: v5e
topology: v5e:2x2
jax: 0.10.0
libtpu: 0.0.40
codegen_flags: <defaults>
</compile_context>

<pallas_src>
import functools

import jax
import jax.numpy as jnp
from jax import lax
from jax.experimental import pallas as pl
from jax.experimental.pallas import tpu as pltpu


def _normalize_kernel(x_ref, o_ref, *, power):
    # x_ref block: (NB, C, T_HW). Reduce over the channel axis (axis=1) and
    # broadcast the scale over the lane-dense spatial axis.
    x = x_ref[...]
    xf = x.astype(jnp.float32)

    if power == 2:
        # Fast path: VPU multiply + one sqrt on the already-reduced tensor.
        pow_sum = jnp.sum(xf * xf, axis=1, keepdims=True)
        norm = jnp.sqrt(pow_sum)
    elif float(power) == int(power):
        p = int(power)
        pow_sum = jnp.sum(lax.integer_pow(xf, p), axis=1, keepdims=True)
        norm = jnp.power(pow_sum, 1.0 / p)
    else:
        # Non-integer power: matches torch x.pow(p) semantics (NaN for negative base).
        pow_sum = jnp.sum(jnp.power(xf, power), axis=1, keepdims=True)
        norm = jnp.power(pow_sum, 1.0 / power)

    denom = norm + 1e-7
    # EUP approx reciprocal on the (NB, 1, T_HW) tensor + one Newton-Raphson
    # refinement (accuracy ~ exact f32 divide), then one multiply per element
    # instead of C*HW divides.
    inv = pl.reciprocal(denom, approx=True)
    inv = inv * (2.0 - denom * inv)

    # Keep the dominant elementwise pass in the input dtype (bf16-friendly on v6e/v7x).
    o_ref[...] = (x * inv.astype(x.dtype)).astype(o_ref.dtype)


def _round_up(v, m):
    return -(-v // m) * m


def _choose_tiling(n, c, hw, itemsize):
    """Pick (batch_block, hw_tile, padded_hw) under a cross-generation VMEM budget."""
    lane = 128
    # Budget for double-buffered (input + output) blocks: 4 * block_bytes.
    # Kept well under the 32 MiB scoped-VMEM limit we request (safe on v5e/v6e/v7x).
    budget = 8 * 1024 * 1024

    # Lane-dense spatial tile: multiple of 128, target up to 2048 lanes.
    t = min(2048, _round_up(hw, lane))
    max_t = (budget // (4 * max(c, 1) * itemsize)) // lane * lane
    t = max(lane, min(t, max_t))
    hw_pad = _round_up(hw, t)

    # Pack multiple batch elements per grid step when per-image tiles are tiny
    # (amortizes per-step overhead); nb must divide n.
    nb = 1
    for d in range(n, 0, -1):
        if n % d == 0 and 4 * d * c * t * itemsize <= budget:
            nb = d
            break
    return nb, t, hw_pad


def normalize(x, power=2):
    """L-p normalize over dim 1 of an NCHW tensor (matches PyTorch Normalize)."""
    n, c, h, w = x.shape
    hw = h * w
    itemsize = jnp.dtype(x.dtype).itemsize

    nb, t_hw, hw_pad = _choose_tiling(n, c, hw, itemsize)

    x2 = x.reshape(n, c, hw)
    if hw_pad != hw:
        # Keep the output lane axis dense / 128-aligned. Padded columns are zero
        # (harmless: the reduction is over C only) and are sliced off afterwards.
        x2 = jnp.pad(x2, ((0, 0), (0, 0), (0, hw_pad - hw)))

    grid = (n // nb, hw_pad // t_hw)
    block = (nb, c, t_hw)

    out = pl.pallas_call(
        functools.partial(_normalize_kernel, power=power),
        out_shape=jax.ShapeDtypeStruct((n, c, hw_pad), x.dtype),
        grid_spec=pltpu.PrefetchScalarGridSpec(
            num_scalar_prefetch=0,
            grid=grid,
            in_specs=[pl.BlockSpec(block, lambda i, j: (i, 0, j))],
            out_specs=pl.BlockSpec(block, lambda i, j: (i, 0, j)),
        ),
        compiler_params=pltpu.CompilerParams(
            dimension_semantics=("parallel", "parallel"),
            vmem_limit_bytes=32 * 1024 * 1024,
        ),
    )(x2)

    if hw_pad != hw:
        out = out[:, :, :hw]
    return out.reshape(n, c, h, w)


def _reference(x, power=2):
    norm = jnp.power(jnp.sum(jnp.power(x, power), axis=1, keepdims=True), 1.0 / power)
    return x / (norm + 1e-7)


if __name__ == "__main__":
    key = jax.random.PRNGKey(0)
    # Small NCHW input consistent with the module's usage.
    x = jax.random.normal(key, (2, 4, 16, 16), dtype=jnp.float32)

    out = normalize(x, power=2)
    out = jax.block_until_ready(out)

    ref = _reference(x, power=2)
    assert out.shape == x.shape
    assert jnp.allclose(out, ref, atol=1e-4, rtol=1e-4), "mismatch vs reference"

    print("KERNEL_OK")
</pallas_src>

<mosaic_0001>
module attributes {stable_mosaic.version = 11 : i64} {
  func.func @_normalize_kernel(%arg0: i32, %arg1: i32, %arg2: memref<2x4x256xf32, #tpu.memory_space<vmem>>, %arg3: memref<2x4x256xf32, #tpu.memory_space<vmem>>) attributes {dimension_semantics = [#tpu.dimension_semantics<parallel>, #tpu.dimension_semantics<parallel>], iteration_bounds = array<i64: 1, 1>, scalar_prefetch = 0 : i64, scratch_operands = 0 : i64, tpu.core_type = #tpu.core_type<tc>, window_params = [{transform_indices = @transform_0, window_bounds = array<i64: 2, 4, 256>}, {transform_indices = @transform_1, window_bounds = array<i64: 2, 4, 256>}]} {
    %c0 = arith.constant 0 : index
    %c0_0 = arith.constant 0 : index
    %c0_1 = arith.constant 0 : index
    %0 = vector.load %arg2[%c0, %c0_0, %c0_1] : memref<2x4x256xf32, #tpu.memory_space<vmem>>, vector<2x4x256xf32>
    %1 = arith.mulf %0, %0 : vector<2x4x256xf32>
    %cst = arith.constant dense<0.000000e+00> : vector<2x256xf32>
    %2 = vector.multi_reduction <add>, %1, %cst [1] : vector<2x4x256xf32> to vector<2x256xf32>
    %3 = vector.shape_cast %2 : vector<2x256xf32> to vector<2x1x256xf32>
    %4 = math.sqrt %3 : vector<2x1x256xf32>
    %cst_2 = arith.constant 1.000000e-07 : f32
    %5 = vector.broadcast %cst_2 : f32 to vector<2x1x256xf32>
    %6 = arith.addf %4, %5 : vector<2x1x256xf32>
    %7 = tpu.reciprocal %6 {approx = true} : vector<2x1x256xf32> -> vector<2x1x256xf32>
    %8 = arith.mulf %6, %7 : vector<2x1x256xf32>
    %cst_3 = arith.constant 2.000000e+00 : f32
    %9 = vector.broadcast %cst_3 : f32 to vector<2x1x256xf32>
    %10 = arith.subf %9, %8 : vector<2x1x256xf32>
    %11 = arith.mulf %7, %10 : vector<2x1x256xf32>
    %12 = vector.broadcast %11 : vector<2x1x256xf32> to vector<2x4x256xf32>
    %13 = arith.mulf %0, %12 : vector<2x4x256xf32>
    %c0_4 = arith.constant 0 : index
    %c0_5 = arith.constant 0 : index
    %c0_6 = arith.constant 0 : index
    %14 = vector.load %arg3[%c0_4, %c0_5, %c0_6] : memref<2x4x256xf32, #tpu.memory_space<vmem>>, vector<2x4x256xf32>
    tpu.vector_store %arg3[%c0_4, %c0_5, %c0_6], %13 {strides = array<i32>} : memref<2x4x256xf32, #tpu.memory_space<vmem>>, vector<2x4x256xf32>,
    return
  }
  func.func @transform_0(%arg0: i32, %arg1: i32) -> (i32, i32, i32) {
    %c0_i32 = arith.constant 0 : i32
    %c0_i32_0 = arith.constant 0 : i32
    return %arg0, %c0_i32, %arg1 : i32, i32, i32
  }
  func.func @transform_1(%arg0: i32, %arg1: i32) -> (i32, i32, i32) {
    %c0_i32 = arith.constant 0 : i32
    %c0_i32_0 = arith.constant 0 : i32
    return %arg0, %c0_i32, %arg1 : i32, i32, i32
  }
}

</mosaic_0001>

<llo_original>
// kernel: tpu_custom_call.1
$region0: #{tpu_custom_call.1}
  #allocation0 [shape = 'u32[]', space=smem, size = 0x4, offset = 0x4, fixed_abs, tag = 'smem constant byte address 0x4 - core index']
  #allocation1 [shape = 'u32[72,128]{1,0:T(1,128)}', space=vmem, size = 0x9000, scoped, tag = 'internal scratch']
  %s0 = inlined_call_operand.hbm [shape: f32[2,4,256], index: 0, kind: input, shape index: {}]
  %s1 = inlined_call_operand.hbm [shape: f32[2,4,256], index: 1, kind: output, shape index: {}]
  %s2 = sld [smem:[#allocation0]]
  $region18: #{tpu_custom_call.1} parent=0
    _
  %s4 = ssub.s32 1, %s2
  %s5 = scalar_select 0, %s4, %s2
  $region1: #{tpu_custom_call.1} parent=0
    #allocation2 [shape = 'u8[8192]{0}', space=vmem, size = 0x2000, scoped, tag = 'input window, operand 0, single buffered']
    #allocation3 [shape = 's32[1]{0}', space=sflag, size = 0x4, scoped, tag = 'scoped memory for tpu_custom_call.1']
    #allocation4 [shape = 's32[1]{0}', space=sflag, size = 0x4, scoped, tag = 'scoped memory for tpu_custom_call.1']
    #allocation5 [shape = 'u8[8192]{0}', space=vmem, size = 0x2000, scoped, tag = 'output window, operand 0, single buffered']
    %6 = vsyncpa [#allocation3], 0
    %7 = vsyncpa [#allocation4], 0
    // Predicated region
    $region2: #{tpu_custom_call.1} parent=1 // pred_check
      _
    $region3: #{tpu_custom_call.1} parent=1 // pred_check_branch
      %9 = sbr.rel (0) target = $region5
    $region4: #{tpu_custom_call.1} parent=1 // pred_region
      %11 = vsyncadd [#allocation3], 0
      %s12 = sshll.u32 %s0, 4
      %s13 = int_to_ptr.hbm [resolvable:$true] %s12
      %s14 = sshll.u32 [#allocation2], 4
      %s15 = int_to_ptr.vmem [resolvable:$true] %s14
      %20 = dma.hbm_to_vmem [thread:$0]  %s13, 256, %s15, [#allocation3], 128, 128, 8
    $region5: #{tpu_custom_call.1} parent=1 // pred_fallthru
      _
    // Predicated region
    $region6: #{tpu_custom_call.1} parent=1 // pred_check
      _
    $region7: #{tpu_custom_call.1} parent=1 // pred_check_branch
      %22 = sbr.rel (0) target = $region9
    $region8: #{tpu_custom_call.1} parent=1 // pred_region
      %24 = dma.done [#allocation3], 256
    $region9: #{tpu_custom_call.1} parent=1 // pred_fallthru
      _
    %v25 = vld [vmem:[#allocation2] sm:$0xff]
    %v26 = vld [vmem:[#allocation2 + $0x8] sm:$0xff]
    %v27 = vmul.f32 %v25, %v25
    %v28 = vmul.f32 %v26, %v26
    %31 = vst [vmem:[#allocation1] ss:$2 sm:$0xff] %v27
    %v32 = vld.sshfl [vmem:[#allocation1] sm:$0xff pattern:$0x75316420]
    %v33 = vld.sshfl [vmem:[#allocation1 + $0x8] sm:$0xff pattern:$0x75316420]
    %s34 = scalar_lea.vmem [#allocation1], 16
    %35 = vst [vmem:[%s34] ss:$2 sm:$0xff] %v28
    %v36 = vld.sshfl [vmem:[#allocation1 + $0x10] sm:$0xff pattern:$0x75316420]
    %v37 = vld.sshfl [vmem:[#allocation1 + $0x18] sm:$0xff pattern:$0x75316420]
    %vm42 = vcmask 1043456
    %v43 = vsel %vm42, %v32, 0.0
    %v44 = vrot.slane %v43, 4
    %v45 = vadd.f32 %v43, %v44
    %v46 = vrot.slane %v45, 2
    %v47 = vadd.f32 %v45, %v46
    %v48 = vrot.slane %v47, 1
    %v49 = vadd.f32 %v47, %v48
    %v50 = vsel %vm42, %v33, 0.0
    %v51 = vrot.slane %v50, 4
    %v52 = vadd.f32 %v50, %v51
    %v53 = vrot.slane %v52, 2
    %v54 = vadd.f32 %v52, %v53
    %v55 = vrot.slane %v54, 1
    %v56 = vadd.f32 %v54, %v55
    %v57 = vsel %vm42, %v36, 0.0
    %v58 = vrot.slane %v57, 4
    %v59 = vadd.f32 %v57, %v58
    %v60 = vrot.slane %v59, 2
    %v61 = vadd.f32 %v59, %v60
    %v62 = vrot.slane %v61, 1
    %v63 = vadd.f32 %v61, %v62
    %v64 = vsel %vm42, %v37, 0.0
    %v65 = vrot.slane %v64, 4
    %v66 = vadd.f32 %v64, %v65
    %v67 = vrot.slane %v66, 2
    %v68 = vadd.f32 %v66, %v67
    %v69 = vrot.slane %v68, 1
    %v70 = vadd.f32 %v68, %v69
    %v71 = vrsqrt.pop %v49
    %v72 = vmul.f32 %v71, %v49
    %v73 = vmul.f32 %v72, %v71
    %v74 = vmul.f32 0.5, %v73
    %v75 = vsub.f32 1.5, %v74
    %v76 = vmul.f32 %v71, %v75
    %v77 = vmul.f32 %v49, %v76
    %vm78 = vcmp.eq.f32.partialorder %v49, inf
    %v79 = vsel %vm78, %v49, %v77
    %vm80 = vcmp.eq.f32.partialorder %v49, 0.0
    %v81 = vand.u32 %v49, 2147483648
    %v82 = vsel %vm80, %v81, %v79
    %v83 = vrsqrt.pop %v56
    %v84 = vmul.f32 %v83, %v56
    %v85 = vmul.f32 %v84, %v83
    %v86 = vmul.f32 0.5, %v85
    %v87 = vsub.f32 1.5, %v86
    %v88 = vmul.f32 %v83, %v87
    %v89 = vmul.f32 %v56, %v88
    %vm90 = vcmp.eq.f32.partialorder %v56, inf
    %v91 = vsel %vm90, %v56, %v89
    %vm92 = vcmp.eq.f32.partialorder %v56, 0.0
    %v93 = vand.u32 %v56, 2147483648
    %v94 = vsel %vm92, %v93, %v91
    %v95 = vrsqrt.pop %v63
    %v96 = vmul.f32 %v95, %v63
    %v97 = vmul.f32 %v96, %v95
    %v98 = vmul.f32 0.5, %v97
    %v99 = vsub.f32 1.5, %v98
    %v100 = vmul.f32 %v95, %v99
    %v101 = vmul.f32 %v63, %v100
    %vm102 = vcmp.eq.f32.partialorder %v63, inf
    %v103 = vsel %vm102, %v63, %v101
    %vm104 = vcmp.eq.f32.partialorder %v63, 0.0
    %v105 = vand.u32 %v63, 2147483648
    %v106 = vsel %vm104, %v105, %v103
    %v107 = vrsqrt.pop %v70
    %v108 = vmul.f32 %v107, %v70
    %v109 = vmul.f32 %v108, %v107
    %v110 = vmul.f32 0.5, %v109
    %v111 = vsub.f32 1.5, %v110
    %v112 = vmul.f32 %v107, %v111
    %v113 = vmul.f32 %v70, %v112
    %vm114 = vcmp.eq.f32.partialorder %v70, inf
    %v115 = vsel %vm114, %v70, %v113
    %vm116 = vcmp.eq.f32.partialorder %v70, 0.0
    %v117 = vand.u32 %v70, 2147483648
    %v118 = vsel %vm116, %v117, %v115
    %v119 = vadd.f32 %v82, 1e-07
    %v120 = vadd.f32 %v94, 1e-07
    %v121 = vadd.f32 %v106, 1e-07
    %v122 = vadd.f32 %v118, 1e-07
    %v123 = vrcp.pop %v119
    %v124 = vrcp.pop %v120
    %v125 = vrcp.pop %v121
    %v126 = vrcp.pop %v122
    %v127 = vmul.f32 %v119, %v123
    %v128 = vmul.f32 %v120, %v124
    %v129 = vmul.f32 %v121, %v125
    %v130 = vmul.f32 %v122, %v126
    %v131 = vsub.f32 2.0, %v127
    %v132 = vsub.f32 2.0, %v128
    %v133 = vsub.f32 2.0, %v129
    %v134 = vsub.f32 2.0, %v130
    %v135 = vmul.f32 %v123, %v131
    %v136 = vmul.f32 %v124, %v132
    %v137 = vmul.f32 %v125, %v133
    %v138 = vmul.f32 %v126, %v134
    %v143 = vrot.slane %v136, 4
    %v144 = vrot.slane %v138, 4
    %v145 = vsel %vm42, %v135, %v143
    %v146 = vsel %vm42, %v137, %v144
    %v149 = vmul.f32 %v25, %v145
    %v150 = vmul.f32 %v26, %v146
    %151 = vst [vmem:[#allocation5] sm:$0xff] %v149
    %152 = vst [vmem:[#allocation5 + $0x8] sm:$0xff] %v150
    // Predicated region
    $region10: #{tpu_custom_call.1} parent=1 // pred_check
      _
    $region11: #{tpu_custom_call.1} parent=1 // pred_check_branch
      %154 = sbr.rel (0) target = $region13
    $region12: #{tpu_custom_call.1} parent=1 // pred_region
      %156 = vsyncadd [#allocation4], 0
      %s157 = sshll.u32 [#allocation5], 4
      %s158 = int_to_ptr.vmem [resolvable:$true] %s157
      %s159 = sshll.u32 %s1, 4
      %s160 = int_to_ptr.hbm [resolvable:$true] %s159
      %165 = dma.vmem_to_hbm [thread:$0]  %s158, 256, %s160, [#allocation4], 128, 128, 8
    $region13: #{tpu_custom_call.1} parent=1 // pred_fallthru
      _
    // Predicated region
    $region14: #{tpu_custom_call.1} parent=1 // pred_check
      _
    $region15: #{tpu_custom_call.1} parent=1 // pred_check_branch
      %167 = sbr.rel (0) target = $region17
    $region16: #{tpu_custom_call.1} parent=1 // pred_region
      %169 = dma.done [#allocation4], 256
    $region17: #{tpu_custom_call.1} parent=1 // pred_fallthru
      _
    %170 = vsyncpa [#allocation3], 1
    %171 = vsyncpa [#allocation4], 1

</llo_original>
